<compile_context>
chip_gen: v5e
topology: v5e:2x2
jax: 0.10.0
libtpu: 0.0.40
codegen_flags: <defaults>
</compile_context>

<pallas_src>
import jax
import jax.numpy as jnp
from jax.experimental import pallas as pl
from jax.experimental.pallas import tpu as pltpu


def _mlp_kernel(x_ref, w1t_ref, b1t_ref, w2t_ref, b2t_ref, o_ref):
    # x_ref:   (3, TILE)       w1t_ref: (256, 3)     b1t_ref: (256, 1)
    # w2t_ref: (16, 256)       b2t_ref: (16, 1)      o_ref:   (16, TILE)
    x = x_ref[...]
    w1t = w1t_ref[...]
    in_f = x_ref.shape[0]  # static (=3)

    # ---- Layer 1 (K=3): VPU broadcast FMAs instead of a padded MXU pass.
    # (256,1) * (1,TILE) outer-product broadcasts, accumulated in f32.
    h = b1t_ref[...].astype(jnp.float32) + w1t[:, 0:1] * x[0:1, :]
    for k in range(1, in_f):        # trip count 3, fully unrolled at trace time
        h = h + w1t[:, k:k + 1] * x[k:k + 1, :]
    h = jnp.maximum(h, 0.0)         # ReLU, (256, TILE)

    # ---- Layer 2 (K=256): full-width MXU matmul, lane-dense output tile.
    out = jnp.dot(w2t_ref[...], h, preferred_element_type=jnp.float32)
    out = out + b2t_ref[...]
    o_ref[...] = out.astype(o_ref.dtype)


def pos2weight_forward(x, params, scale_int=None, *, tile_n=2048):
    """Forward pass of Pos2Weight.meta_block on (N, 3) position codes.
    `scale_int` is unused, matching the PyTorch module."""
    del scale_int
    w1, b1, w2, b2 = params            # (3,256), (1,256), (256,16), (1,16)
    n, in_f = x.shape
    hid = w1.shape[1]
    out_f = w2.shape[1]

    # Lane-dense transposed operands (weights are tiny; x^T is one layout op).
    w1_t = w1.T                        # (256, 3)
    b1_t = b1.reshape(1, hid).T        # (256, 1)
    w2_t = w2.T                        # (16, 256)
    b2_t = b2.reshape(1, out_f).T      # (16, 1)

    # Tile over N on the lane axis: multiple of 128 (unmasked stores), at most
    # tile_n, and capped so the grid has >= 2 blocks when N allows it (v7x).
    n_blocks_128 = pl.cdiv(n, 128)
    tile = max(128, min(tile_n, n_blocks_128 * 128))
    if n_blocks_128 >= 2:
        tile = min(tile, pl.cdiv(n_blocks_128, 2) * 128)
    n_pad = pl.cdiv(n, tile) * tile

    x_t = x.T                          # (3, N)
    if n_pad != n:
        # Fuses with the transpose above; no extra full-array HBM pass.
        x_t = jnp.pad(x_t, ((0, 0), (0, n_pad - n)))

    grid = (n_pad // tile,)

    out_t = pl.pallas_call(
        _mlp_kernel,
        out_shape=jax.ShapeDtypeStruct((out_f, n_pad), x.dtype),
        grid_spec=pltpu.PrefetchScalarGridSpec(
            num_scalar_prefetch=0,
            grid=grid,
            in_specs=[
                pl.BlockSpec((in_f, tile), lambda i: (0, i)),   # x^T tile
                pl.BlockSpec((hid, in_f), lambda i: (0, 0)),    # w1^T (resident)
                pl.BlockSpec((hid, 1), lambda i: (0, 0)),       # b1^T
                pl.BlockSpec((out_f, hid), lambda i: (0, 0)),   # w2^T
                pl.BlockSpec((out_f, 1), lambda i: (0, 0)),     # b2^T
            ],
            out_specs=pl.BlockSpec((out_f, tile), lambda i: (0, i)),
        ),
        compiler_params=pltpu.CompilerParams(
            dimension_semantics=("parallel",),
        ),
    )(x_t, w1_t, b1_t, w2_t, b2_t)

    # Padded tail columns hold relu(b1) @ w2 + b2 garbage; sliced off here.
    return out_t[:, :n].T              # (N, 16)


def init_pos2weight_params(key, in_features=3, hidden=256, out_features=16,
                           dtype=jnp.float32):
    """Deterministic init mimicking PyTorch nn.Linear default (uniform
    +-1/sqrt(fan_in)).  Weights stored as (in, out)."""
    k1, k2, k3, k4 = jax.random.split(key, 4)
    bound1 = 1.0 / jnp.sqrt(jnp.array(in_features, dtype))
    bound2 = 1.0 / jnp.sqrt(jnp.array(hidden, dtype))
    w1 = jax.random.uniform(k1, (in_features, hidden), dtype, -bound1, bound1)
    b1 = jax.random.uniform(k2, (1, hidden), dtype, -bound1, bound1)
    w2 = jax.random.uniform(k3, (hidden, out_features), dtype, -bound2, bound2)
    b2 = jax.random.uniform(k4, (1, out_features), dtype, -bound2, bound2)
    return (w1, b1, w2, b2)


def pos2weight_reference(x, params):
    w1, b1, w2, b2 = params
    h = jnp.maximum(
        jnp.dot(x, w1, precision=jax.lax.Precision.HIGHEST) + b1, 0.0)
    return jnp.dot(h, w2, precision=jax.lax.Precision.HIGHEST) + b2


if __name__ == "__main__":
    key = jax.random.PRNGKey(0)
    k_param, k_x = jax.random.split(key)

    # Pos2Weight's forward is an MLP over (N, 3) position codes.
    # Small synthetic shape: N = 2 * 16 * 16 = 512 positions.
    N = 2 * 16 * 16
    x = jax.random.normal(k_x, (N, 3), dtype=jnp.float32)
    params = init_pos2weight_params(k_param)

    out = pos2weight_forward(x, params, scale_int=2)
    out = jax.block_until_ready(out)

    ref = pos2weight_reference(x, params)
    assert out.shape == (N, 16), out.shape
    assert jnp.allclose(out, ref, atol=1e-4, rtol=1e-4), "mismatch vs reference"

    print("KERNEL_OK")
</pallas_src>

<mosaic_0001>
module attributes {stable_mosaic.version = 11 : i64} {
  func.func @_mlp_kernel(%arg0: i32, %arg1: memref<3x256xf32, #tpu.memory_space<vmem>>, %arg2: memref<256x3xf32, #tpu.memory_space<vmem>>, %arg3: memref<256x1xf32, #tpu.memory_space<vmem>>, %arg4: memref<16x256xf32, #tpu.memory_space<vmem>>, %arg5: memref<16x1xf32, #tpu.memory_space<vmem>>, %arg6: memref<16x256xf32, #tpu.memory_space<vmem>>) attributes {dimension_semantics = [#tpu.dimension_semantics<parallel>], iteration_bounds = array<i64: 2>, scalar_prefetch = 0 : i64, scratch_operands = 0 : i64, tpu.core_type = #tpu.core_type<tc>, window_params = [{transform_indices = @transform_0, window_bounds = array<i64: 3, 256>}, {pipeline_mode = #tpu.pipeline_mode<synchronous>, transform_indices = @transform_1, window_bounds = array<i64: 256, 3>}, {pipeline_mode = #tpu.pipeline_mode<synchronous>, transform_indices = @transform_2, window_bounds = array<i64: 256, 1>}, {pipeline_mode = #tpu.pipeline_mode<synchronous>, transform_indices = @transform_3, window_bounds = array<i64: 16, 256>}, {pipeline_mode = #tpu.pipeline_mode<synchronous>, transform_indices = @transform_4, window_bounds = array<i64: 16, 1>}, {transform_indices = @transform_5, window_bounds = array<i64: 16, 256>}]} {
    %c0 = arith.constant 0 : index
    %c0_0 = arith.constant 0 : index
    %0 = vector.load %arg1[%c0, %c0_0] : memref<3x256xf32, #tpu.memory_space<vmem>>, vector<3x256xf32>
    %c0_1 = arith.constant 0 : index
    %c0_2 = arith.constant 0 : index
    %1 = vector.load %arg2[%c0_1, %c0_2] : memref<256x3xf32, #tpu.memory_space<vmem>>, vector<256x3xf32>
    %c0_3 = arith.constant 0 : index
    %c0_4 = arith.constant 0 : index
    %2 = vector.load %arg3[%c0_3, %c0_4] : memref<256x1xf32, #tpu.memory_space<vmem>>, vector<256x1xf32>
    %3 = vector.extract_strided_slice %1 {offsets = [0, 0], sizes = [256, 1], strides = [1, 1]} : vector<256x3xf32> to vector<256x1xf32>
    %4 = vector.extract_strided_slice %0 {offsets = [0, 0], sizes = [1, 256], strides = [1, 1]} : vector<3x256xf32> to vector<1x256xf32>
    %5 = vector.broadcast %3 : vector<256x1xf32> to vector<256x256xf32>
    %6 = vector.broadcast %4 : vector<1x256xf32> to vector<256x256xf32>
    %7 = arith.mulf %5, %6 : vector<256x256xf32>
    %8 = vector.broadcast %2 : vector<256x1xf32> to vector<256x256xf32>
    %9 = arith.addf %8, %7 : vector<256x256xf32>
    %10 = vector.extract_strided_slice %1 {offsets = [0, 1], sizes = [256, 1], strides = [1, 1]} : vector<256x3xf32> to vector<256x1xf32>
    %11 = vector.extract_strided_slice %0 {offsets = [1, 0], sizes = [1, 256], strides = [1, 1]} : vector<3x256xf32> to vector<1x256xf32>
    %12 = vector.broadcast %10 : vector<256x1xf32> to vector<256x256xf32>
    %13 = vector.broadcast %11 : vector<1x256xf32> to vector<256x256xf32>
    %14 = arith.mulf %12, %13 : vector<256x256xf32>
    %15 = arith.addf %9, %14 : vector<256x256xf32>
    %16 = vector.extract_strided_slice %1 {offsets = [0, 2], sizes = [256, 1], strides = [1, 1]} : vector<256x3xf32> to vector<256x1xf32>
    %17 = vector.extract_strided_slice %0 {offsets = [2, 0], sizes = [1, 256], strides = [1, 1]} : vector<3x256xf32> to vector<1x256xf32>
    %18 = vector.broadcast %16 : vector<256x1xf32> to vector<256x256xf32>
    %19 = vector.broadcast %17 : vector<1x256xf32> to vector<256x256xf32>
    %20 = arith.mulf %18, %19 : vector<256x256xf32>
    %21 = arith.addf %15, %20 : vector<256x256xf32>
    %cst = arith.constant 0.000000e+00 : f32
    %22 = vector.broadcast %cst : f32 to vector<256x256xf32>
    %23 = arith.maximumf %21, %22 : vector<256x256xf32>
    %c0_5 = arith.constant 0 : index
    %c0_6 = arith.constant 0 : index
    %24 = vector.load %arg4[%c0_5, %c0_6] : memref<16x256xf32, #tpu.memory_space<vmem>>, vector<16x256xf32>
    %cst_7 = arith.constant dense<0.000000e+00> : vector<16x256xf32>
    %25 = tpu.matmul %24, %23, %cst_7 {dimension_numbers = #tpu.dot_dimension_numbers<[1], [0], [0], [1], [0, 0, 1, 1], [], []>} : vector<16x256xf32>, vector<256x256xf32>, vector<16x256xf32> -> vector<16x256xf32>
    %c0_8 = arith.constant 0 : index
    %c0_9 = arith.constant 0 : index
    %26 = vector.load %arg5[%c0_8, %c0_9] : memref<16x1xf32, #tpu.memory_space<vmem>>, vector<16x1xf32>
    %27 = vector.broadcast %26 : vector<16x1xf32> to vector<16x256xf32>
    %28 = arith.addf %25, %27 : vector<16x256xf32>
    %c0_10 = arith.constant 0 : index
    %c0_11 = arith.constant 0 : index
    %29 = vector.load %arg6[%c0_10, %c0_11] : memref<16x256xf32, #tpu.memory_space<vmem>>, vector<16x256xf32>
    tpu.vector_store %arg6[%c0_10, %c0_11], %28 {strides = array<i32>} : memref<16x256xf32, #tpu.memory_space<vmem>>, vector<16x256xf32>,
    return
  }
  func.func @transform_0(%arg0: i32) -> (i32, i32) {
    %c0_i32 = arith.constant 0 : i32
    %c0_i32_0 = arith.constant 0 : i32
    return %c0_i32, %arg0 : i32, i32
  }
  func.func @transform_1(%arg0: i32) -> (i32, i32) {
    %c0_i32 = arith.constant 0 : i32
    %c0_i32_0 = arith.constant 0 : i32
    %c0_i32_1 = arith.constant 0 : i32
    return %c0_i32, %c0_i32_0 : i32, i32
  }
  func.func @transform_2(%arg0: i32) -> (i32, i32) {
    %c0_i32 = arith.constant 0 : i32
    %c0_i32_0 = arith.constant 0 : i32
    %c0_i32_1 = arith.constant 0 : i32
    return %c0_i32, %c0_i32_0 : i32, i32
  }
  func.func @transform_3(%arg0: i32) -> (i32, i32) {
    %c0_i32 = arith.constant 0 : i32
    %c0_i32_0 = arith.constant 0 : i32
    %c0_i32_1 = arith.constant 0 : i32
    return %c0_i32, %c0_i32_0 : i32, i32
  }
  func.func @transform_4(%arg0: i32) -> (i32, i32) {
    %c0_i32 = arith.constant 0 : i32
    %c0_i32_0 = arith.constant 0 : i32
    %c0_i32_1 = arith.constant 0 : i32
    return %c0_i32, %c0_i32_0 : i32, i32
  }
  func.func @transform_5(%arg0: i32) -> (i32, i32) {
    %c0_i32 = arith.constant 0 : i32
    %c0_i32_0 = arith.constant 0 : i32
    return %c0_i32, %arg0 : i32, i32
  }
}

</mosaic_0001>

<llo_original>
// kernel: tpu_custom_call.1
$region0: #{tpu_custom_call.1}
  #allocation0 [shape = 'u32[]', space=smem, size = 0x4, offset = 0x4, fixed_abs, tag = 'smem constant byte address 0x4 - core index']
  #allocation1 [shape = 'u32[72,128]{1,0:T(1,128)}', space=vmem, size = 0x9000, scoped, tag = 'internal scratch']
  %s0 = inlined_call_operand.vmem [shape: f32[3,512], index: 0, kind: input, shape index: {}]
  %s1 = inlined_call_operand.vmem [shape: f32[256,3], index: 1, kind: input, shape index: {}]
  %s2 = inlined_call_operand.vmem [shape: f32[256,1], index: 2, kind: input, shape index: {}]
  %s3 = inlined_call_operand.vmem [shape: f32[16,256], index: 3, kind: input, shape index: {}]
  %s4 = inlined_call_operand.vmem [shape: f32[16,1], index: 4, kind: input, shape index: {}]
  %s5 = inlined_call_operand.hbm [shape: f32[16,512], index: 5, kind: output, shape index: {}]
  %s6 = sld [smem:[#allocation0]]
  $region53: #{tpu_custom_call.1} parent=0
    _
  %s8 = ssub.s32 1, %s6
  %s9 = scalar_select 0, %s8, %s6
  $region1: #{tpu_custom_call.1} parent=0
    #allocation2 [shape = 'u8[32768]{0}', space=vmem, size = 0x8000, scoped, tag = 'output window, operand 0']
    #allocation3 [shape = 's32[2]{0}', space=sflag, size = 0x8, scoped, tag = 'scoped memory for tpu_custom_call.1']
    %10 = vsyncpa [#allocation3], 0
    %s11 = scalar_lea.sflag [#allocation3], 1
    %12 = vsyncpa %s11, 0
    loop: start=0, step=1, limit=4
    $region2: #{tpu_custom_call.1} parent=1 // loop_pre_header
      _
    $region3: #{tpu_custom_call.1} parent=1 // loop_header
      %s14 = sphi 0, %s18
      %p15 = scmp.ge.s32.totalorder %s14, 4
      %s24 = sphi 0, %s26
      %s27 = sphi 0, %s24
      %s28 = sphi 0, %s27
      %s44 = sphi 0, %s28
      %s48 = sphi 0, %s48
      %s50 = sphi 0, %s48
      %s51 = sphi 0, %s50
      %s65 = sphi 0, %s51
      %s69 = sphi 0, %s69
      %s71 = sphi 0, %s69
      %s72 = sphi 0, %s71
      %s86 = sphi 0, %s72
      %s90 = sphi 0, %s90
      %s92 = sphi 0, %s90
      %s93 = sphi 0, %s92
      %s107 = sphi 0, %s93
      %s111 = sphi 0, %s111
      %s113 = sphi 0, %s111
      %s114 = sphi 0, %s113
      %s128 = sphi 0, %s114
      %s134 = sphi 0, %s136
      %s137 = sphi 0, %s134
      %s138 = sphi 0, %s137
      %s154 = sphi 0, %s138
    $region4: #{tpu_custom_call.1} parent=1 // loop_header_branch
      %17 = sbr.rel (%p15) target = $region8
    $region5: #{tpu_custom_call.1} parent=1 // loop_body
      %s19 = ssub.s32 %s14, 1
      %s20 = ssub.s32 %s14, 2
      %s21 = sadd.s32 %s14, 1
      %s22 = ssub.s32 %s14, %s21
      %p23 = scmp.eq.s32.totalorder %s22, 0
      %s25 = sadd.s32 %s24, 1
      %s26 = scalar_select %p23, %s24, %s25
      %p29 = pneg %p23
      %p30 = scmp.eq.s32.totalorder %s14, 1
      %p31 = por %p29, %p30
      %p32 = scmp.ne.s32.totalorder %s24, %s27
      %p33 = scmp.eq.s32.totalorder %s14, 0
      %p34 = por %p32, %p33
      %p35 = scmp.ne.s32.totalorder %s24, %s27
      %p36 = scmp.eq.s32.totalorder %s19, 1
      %p37 = por %p35, %p36
      %p38 = scmp.ne.s32.totalorder %s27, %s28
      %p39 = scmp.eq.s32.totalorder %s19, 0
      %p40 = por %p38, %p39
      %p41 = scmp.ne.s32.totalorder %s27, %s28
      %p42 = scmp.eq.s32.totalorder %s20, 1
      %p43 = por %p41, %p42
      %p45 = scmp.ne.s32.totalorder %s28, %s44
      %p46 = scmp.eq.s32.totalorder %s20, 0
      %p47 = por %p45, %p46
      %s49 = sadd.s32 %s48, 1
      %p52 = scmp.eq.s32.totalorder %s14, 1
      %p53 = scmp.ne.s32.totalorder %s48, %s50
      %p54 = scmp.eq.s32.totalorder %s14, 0
      %p55 = por %p53, %p54
      %p56 = scmp.ne.s32.totalorder %s48, %s50
      %p57 = scmp.eq.s32.totalorder %s19, 1
      %p58 = por %p56, %p57
      %p59 = scmp.ne.s32.totalorder %s50, %s51
      %p60 = scmp.eq.s32.totalorder %s19, 0
      %p61 = por %p59, %p60
      %p62 = scmp.ne.s32.totalorder %s50, %s51
      %p63 = scmp.eq.s32.totalorder %s20, 1
      %p64 = por %p62, %p63
      %p66 = scmp.ne.s32.totalorder %s51, %s65
      %p67 = scmp.eq.s32.totalorder %s20, 0
      %p68 = por %p66, %p67
      %s70 = sadd.s32 %s69, 1
      %p73 = scmp.eq.s32.totalorder %s14, 1
      %p74 = scmp.ne.s32.totalorder %s69, %s71
      %p75 = scmp.eq.s32.totalorder %s14, 0
      %p76 = por %p74, %p75
      %p77 = scmp.ne.s32.totalorder %s69, %s71
      %p78 = scmp.eq.s32.totalorder %s19, 1
      %p79 = por %p77, %p78
      %p80 = scmp.ne.s32.totalorder %s71, %s72
      %p81 = scmp.eq.s32.totalorder %s19, 0
      %p82 = por %p80, %p81
      %p83 = scmp.ne.s32.totalorder %s71, %s72
      %p84 = scmp.eq.s32.totalorder %s20, 1
      %p85 = por %p83, %p84
      %p87 = scmp.ne.s32.totalorder %s72, %s86
      %p88 = scmp.eq.s32.totalorder %s20, 0
      %p89 = por %p87, %p88
      %s91 = sadd.s32 %s90, 1
      %p94 = scmp.eq.s32.totalorder %s14, 1
      %p95 = scmp.ne.s32.totalorder %s90, %s92
      %p96 = scmp.eq.s32.totalorder %s14, 0
      %p97 = por %p95, %p96
      %p98 = scmp.ne.s32.totalorder %s90, %s92
      %p99 = scmp.eq.s32.totalorder %s19, 1
      %p100 = por %p98, %p99
      %p101 = scmp.ne.s32.totalorder %s92, %s93
      %p102 = scmp.eq.s32.totalorder %s19, 0
      %p103 = por %p101, %p102
      %p104 = scmp.ne.s32.totalorder %s92, %s93
      %p105 = scmp.eq.s32.totalorder %s20, 1
      %p106 = por %p104, %p105
      %p108 = scmp.ne.s32.totalorder %s93, %s107
      %p109 = scmp.eq.s32.totalorder %s20, 0
      %p110 = por %p108, %p109
      %s112 = sadd.s32 %s111, 1
      %p115 = scmp.eq.s32.totalorder %s14, 1
      %p116 = scmp.ne.s32.totalorder %s111, %s113
      %p117 = scmp.eq.s32.totalorder %s14, 0
      %p118 = por %p116, %p117
      %p119 = scmp.ne.s32.totalorder %s111, %s113
      %p120 = scmp.eq.s32.totalorder %s19, 1
      %p121 = por %p119, %p120
      %p122 = scmp.ne.s32.totalorder %s113, %s114
      %p123 = scmp.eq.s32.totalorder %s19, 0
      %p124 = por %p122, %p123
      %p125 = scmp.ne.s32.totalorder %s113, %s114
      %p126 = scmp.eq.s32.totalorder %s20, 1
      %p127 = por %p125, %p126
      %p129 = scmp.ne.s32.totalorder %s114, %s128
      %p130 = scmp.eq.s32.totalorder %s20, 0
      %p131 = por %p129, %p130
      %s132 = ssub.s32 %s14, %s21
      %p133 = scmp.eq.s32.totalorder %s132, 0
      %s135 = sadd.s32 %s134, 1
      %s136 = scalar_select %p133, %s134, %s135
      %p139 = pneg %p133
      %p140 = scmp.eq.s32.totalorder %s14, 1
      %p141 = por %p139, %p140
      %p142 = scmp.ne.s32.totalorder %s134, %s137
      %p143 = scmp.eq.s32.totalorder %s14, 0
      %p144 = por %p142, %p143
      %p145 = scmp.ne.s32.totalorder %s134, %s137
      %p146 = scmp.eq.s32.totalorder %s19, 1
      %p147 = por %p145, %p146
      %p148 = scmp.ne.s32.totalorder %s137, %s138
      %p149 = scmp.eq.s32.totalorder %s19, 0
      %p150 = por %p148, %p149
      %p151 = scmp.ne.s32.totalorder %s137, %s138
      %p152 = scmp.eq.s32.totalorder %s20, 1
      %p153 = por %p151, %p152
      %p155 = scmp.ne.s32.totalorder %s138, %s154
      %p156 = scmp.eq.s32.totalorder %s20, 0
      %p157 = por %p155, %p156
      %p158 = scmp.le.s32.totalorder 1, %s14
      %p159 = scmp.lt.s32.totalorder %s14, 3
      %p160 = pnand %p158, %p159
      %p161 = pneg %p160
      // Predicated region
      $region9: #{tpu_custom_call.1} parent=5 // pred_check
        _
      $region10: #{tpu_custom_call.1} parent=5 // pred_check_branch
        %163 = sbr.rel (%p160) target = $region12
      $region11: #{tpu_custom_call.1} parent=5 // pred_region
        %s164 = ssub.s32 %s14, 1
        // Predicated region
        $region13: #{tpu_custom_call.1} parent=11 // pred_check
          %p165 = pneg %p61
        $region14: #{tpu_custom_call.1} parent=11 // pred_check_branch
          %167 = sbr.rel (%p165) target = $region16
        $region15: #{tpu_custom_call.1} parent=11 // pred_region
          _
        $region16: #{tpu_custom_call.1} parent=11 // pred_fallthru
          _
        // Predicated region
        $region17: #{tpu_custom_call.1} parent=11 // pred_check
          %p168 = pneg %p82
        $region18: #{tpu_custom_call.1} parent=11 // pred_check_branch
          %170 = sbr.rel (%p168) target = $region20
        $region19: #{tpu_custom_call.1} parent=11 // pred_region
          _
        $region20: #{tpu_custom_call.1} parent=11 // pred_fallthru
          _
        // Predicated region
        $region21: #{tpu_custom_call.1} parent=11 // pred_check
          %p171 = pneg %p103
        $region22: #{tpu_custom_call.1} parent=11 // pred_check_branch
          %173 = sbr.rel (%p171) target = $region24
        $region23: #{tpu_custom_call.1} parent=11 // pred_region
          _
        $region24: #{tpu_custom_call.1} parent=11 // pred_fallthru
          _
        // Predicated region
        $region25: #{tpu_custom_call.1} parent=11 // pred_check
          %p174 = pneg %p124
        $region26: #{tpu_custom_call.1} parent=11 // pred_check_branch
          %176 = sbr.rel (%p174) target = $region28
        $region27: #{tpu_custom_call.1} parent=11 // pred_region
          _
        $region28: #{tpu_custom_call.1} parent=11 // pred_fallthru
          _
      $region12: #{tpu_custom_call.1} parent=5 // pred_fallthru
        _
      %p177 = scmp.lt.s32.totalorder %s14, 2
      // Predicated region
      $region29: #{tpu_custom_call.1} parent=5 // pred_check
        %p178 = pneg %p177
      $region30: #{tpu_custom_call.1} parent=5 // pred_check_branch
        %180 = sbr.rel (%p178) target = $region32
      $region31: #{tpu_custom_call.1} parent=5 // pred_region
        // Predicated region
        $region33: #{tpu_custom_call.1} parent=31 // pred_check
          %p181 = pneg %p34
        $region34: #{tpu_custom_call.1} parent=31 // pred_check_branch
          %183 = sbr.rel (%p181) target = $region36
        $region35: #{tpu_custom_call.1} parent=31 // pred_region
          %s184 = smul.u32 2, %s14
          %p185 = scmp.lt.s32.totalorder %s184, 3
          %s186 = scalar_select %p185, %s184, 3
          %s187 = smul.addr %s186, 4
          %s188 = scalar_lea.vmem %s0, %s187
          %s189 = smul.u32 2, %s14
        $region36: #{tpu_custom_call.1} parent=31 // pred_fallthru
          _
      $region32: #{tpu_custom_call.1} parent=5 // pred_fallthru
        _
      %p190 = scmp.le.s32.totalorder 1, %s14
      %p191 = scmp.lt.s32.totalorder %s14, 3
      %p192 = pnand %p190, %p191
      %p193 = pneg %p192
      // Predicated region
      $region37: #{tpu_custom_call.1} parent=5 // pred_check
        _
      $region38: #{tpu_custom_call.1} parent=5 // pred_check_branch
        %195 = sbr.rel (%p192) target = $region40
      $region39: #{tpu_custom_call.1} parent=5 // pred_region
        %s196 = ssub.s32 %s14, 1
        %s197 = smul.u32 2, %s19
        %p198 = scmp.lt.s32.totalorder %s197, 3
        %s199 = scalar_select %p198, %s197, 3
        %s200 = smul.addr %s199, 4
        %s201 = scalar_lea.vmem %s0, %s200
        %p202 = pneg %p40
        %p203 = pneg %p37
        %p204 = pneg %p61
        %p205 = pneg %p58
        %p206 = pneg %p82
        %p207 = pneg %p79
        %p208 = pneg %p103
        %p209 = pneg %p100
        %p210 = pneg %p124
        %p211 = pneg %p121
        %p212 = pneg %p150
        %p213 = pneg %p147
        %s214 = sand.u32 %s137, 1
        %s215 = scalar_lea.sflag [#allocation3], %s214
        %s216 = sand.u32 %s137, 1
        %s217 = smul.addr %s216, 32
        %s218 = scalar_lea.vmem [#allocation2], %s217
        %s219 = smul.u32 2, %s19
        %p220 = scmp.lt.s32.totalorder %s219, 3
        %s221 = scalar_select %p220, %s219, 3
        %s222 = smul.addr %s221, 4
        %s223 = scalar_lea.vmem %s0, %s222
        %s224 = smul.u32 2, %s19
        %s225 = smul.u32 2, %s19
        %v226 = vld [vmem:[%s223] sm:$0x77]
        %v227 = vld [vmem:[%s1] sm:$0xff]
        %v228 = vld [vmem:[%s1 + $0x8] sm:$0xff]
        %v229 = vld [vmem:[%s1 + $0x10] sm:$0xff]
        %v230 = vld [vmem:[%s1 + $0x18] sm:$0xff]
        %v231 = vld [vmem:[%s1 + $0x20] sm:$0xff]
        %v232 = vld [vmem:[%s1 + $0x28] sm:$0xff]
        %v233 = vld [vmem:[%s1 + $0x30] sm:$0xff]
        %v234 = vld [vmem:[%s1 + $0x38] sm:$0xff]
        %v235 = vld [vmem:[%s1 + $0x40] sm:$0xff]
        %v236 = vld [vmem:[%s1 + $0x48] sm:$0xff]
        %v237 = vld [vmem:[%s1 + $0x50] sm:$0xff]
        %v238 = vld [vmem:[%s1 + $0x58] sm:$0xff]
        %v239 = vld [vmem:[%s1 + $0x60] sm:$0xff]
        %v240 = vld [vmem:[%s1 + $0x68] sm:$0xff]
        %v241 = vld [vmem:[%s1 + $0x70] sm:$0xff]
        %v242 = vld [vmem:[%s1 + $0x78] sm:$0xff]
        %v243 = vld [vmem:[%s1 + $0x80] sm:$0xff]
        %v244 = vld [vmem:[%s1 + $0x88] sm:$0xff]
        %v245 = vld [vmem:[%s1 + $0x90] sm:$0xff]
        %v246 = vld [vmem:[%s1 + $0x98] sm:$0xff]
        %v247 = vld [vmem:[%s1 + $0xa0] sm:$0xff]
        %v248 = vld [vmem:[%s1 + $0xa8] sm:$0xff]
        %v249 = vld [vmem:[%s1 + $0xb0] sm:$0xff]
        %v250 = vld [vmem:[%s1 + $0xb8] sm:$0xff]
        %v251 = vld [vmem:[%s1 + $0xc0] sm:$0xff]
        %v252 = vld [vmem:[%s1 + $0xc8] sm:$0xff]
        %v253 = vld [vmem:[%s1 + $0xd0] sm:$0xff]
        %v254 = vld [vmem:[%s1 + $0xd8] sm:$0xff]
        %v255 = vld [vmem:[%s1 + $0xe0] sm:$0xff]
        %v256 = vld [vmem:[%s1 + $0xe8] sm:$0xff]
        %v257 = vld [vmem:[%s1 + $0xf0] sm:$0xff]
        %v258 = vld [vmem:[%s1 + $0xf8] sm:$0xff]
        %v259 = vld [vmem:[%s2] sm:$0xff]
        %v260 = vld [vmem:[%s2 + $0x8] sm:$0xff]
        %v261 = vld [vmem:[%s2 + $0x10] sm:$0xff]
        %v262 = vld [vmem:[%s2 + $0x18] sm:$0xff]
        %v263 = vld [vmem:[%s2 + $0x20] sm:$0xff]
        %v264 = vld [vmem:[%s2 + $0x28] sm:$0xff]
        %v265 = vld [vmem:[%s2 + $0x30] sm:$0xff]
        %v266 = vld [vmem:[%s2 + $0x38] sm:$0xff]
        %v267 = vld [vmem:[%s2 + $0x40] sm:$0xff]
        %v268 = vld [vmem:[%s2 + $0x48] sm:$0xff]
        %v269 = vld [vmem:[%s2 + $0x50] sm:$0xff]
        %v270 = vld [vmem:[%s2 + $0x58] sm:$0xff]
        %v271 = vld [vmem:[%s2 + $0x60] sm:$0xff]
        %v272 = vld [vmem:[%s2 + $0x68] sm:$0xff]
        %v273 = vld [vmem:[%s2 + $0x70] sm:$0xff]
        %v274 = vld [vmem:[%s2 + $0x78] sm:$0xff]
        %v275 = vld [vmem:[%s2 + $0x80] sm:$0xff]
        %v276 = vld [vmem:[%s2 + $0x88] sm:$0xff]
        %v277 = vld [vmem:[%s2 + $0x90] sm:$0xff]
        %v278 = vld [vmem:[%s2 + $0x98] sm:$0xff]
        %v279 = vld [vmem:[%s2 + $0xa0] sm:$0xff]
        %v280 = vld [vmem:[%s2 + $0xa8] sm:$0xff]
        %v281 = vld [vmem:[%s2 + $0xb0] sm:$0xff]
        %v282 = vld [vmem:[%s2 + $0xb8] sm:$0xff]
        %v283 = vld [vmem:[%s2 + $0xc0] sm:$0xff]
        %v284 = vld [vmem:[%s2 + $0xc8] sm:$0xff]
        %v285 = vld [vmem:[%s2 + $0xd0] sm:$0xff]
        %v286 = vld [vmem:[%s2 + $0xd8] sm:$0xff]
        %v287 = vld [vmem:[%s2 + $0xe0] sm:$0xff]
        %v288 = vld [vmem:[%s2 + $0xe8] sm:$0xff]
        %v289 = vld [vmem:[%s2 + $0xf0] sm:$0xff]
        %v290 = vld [vmem:[%s2 + $0xf8] sm:$0xff]
        %292 = vset.pattern.permute.xlu0 0
        %293 = vperm.xlu0 %292, %v227
        %v294 = vpop.permute.xlu0 %293
        %297 = vset.pattern.permute.xlu0 0
        %298 = vperm.xlu0 %297, %v228
        %v299 = vpop.permute.xlu0 %298
        %302 = vset.pattern.permute.xlu0 0
        %303 = vperm.xlu0 %302, %v229
        %v304 = vpop.permute.xlu0 %303
        %307 = vset.pattern.permute.xlu0 0
        %308 = vperm.xlu0 %307, %v230
        %v309 = vpop.permute.xlu0 %308
        %312 = vset.pattern.permute.xlu0 0
        %313 = vperm.xlu0 %312, %v231
        %v314 = vpop.permute.xlu0 %313
        %317 = vset.pattern.permute.xlu0 0
        %318 = vperm.xlu0 %317, %v232
        %v319 = vpop.permute.xlu0 %318
        %322 = vset.pattern.permute.xlu0 0
        %323 = vperm.xlu0 %322, %v233
        %v324 = vpop.permute.xlu0 %323
        %327 = vset.pattern.permute.xlu0 0
        %328 = vperm.xlu0 %327, %v234
        %v329 = vpop.permute.xlu0 %328
        %332 = vset.pattern.permute.xlu0 0
        %333 = vperm.xlu0 %332, %v235
        %v334 = vpop.permute.xlu0 %333
        %337 = vset.pattern.permute.xlu0 0
        %338 = vperm.xlu0 %337, %v236
        %v339 = vpop.permute.xlu0 %338
        %342 = vset.pattern.permute.xlu0 0
        %343 = vperm.xlu0 %342, %v237
        %v344 = vpop.permute.xlu0 %343
        %347 = vset.pattern.permute.xlu0 0
        %348 = vperm.xlu0 %347, %v238
        %v349 = vpop.permute.xlu0 %348
        %352 = vset.pattern.permute.xlu0 0
        %353 = vperm.xlu0 %352, %v239
        %v354 = vpop.permute.xlu0 %353
        %357 = vset.pattern.permute.xlu0 0
        %358 = vperm.xlu0 %357, %v240
        %v359 = vpop.permute.xlu0 %358
        %362 = vset.pattern.permute.xlu0 0
        %363 = vperm.xlu0 %362, %v241
        %v364 = vpop.permute.xlu0 %363
        %367 = vset.pattern.permute.xlu0 0
        %368 = vperm.xlu0 %367, %v242
        %v369 = vpop.permute.xlu0 %368
        %372 = vset.pattern.permute.xlu0 0
        %373 = vperm.xlu0 %372, %v243
        %v374 = vpop.permute.xlu0 %373
        %377 = vset.pattern.permute.xlu0 0
        %378 = vperm.xlu0 %377, %v244
        %v379 = vpop.permute.xlu0 %378
        %382 = vset.pattern.permute.xlu0 0
        %383 = vperm.xlu0 %382, %v245
        %v384 = vpop.permute.xlu0 %383
        %387 = vset.pattern.permute.xlu0 0
        %388 = vperm.xlu0 %387, %v246
        %v389 = vpop.permute.xlu0 %388
        %392 = vset.pattern.permute.xlu0 0
        %393 = vperm.xlu0 %392, %v247
        %v394 = vpop.permute.xlu0 %393
        %397 = vset.pattern.permute.xlu0 0
        %398 = vperm.xlu0 %397, %v248
        %v399 = vpop.permute.xlu0 %398
        %402 = vset.pattern.permute.xlu0 0
        %403 = vperm.xlu0 %402, %v249
        %v404 = vpop.permute.xlu0 %403
        %407 = vset.pattern.permute.xlu0 0
        %408 = vperm.xlu0 %407, %v250
        %v409 = vpop.permute.xlu0 %408
        %412 = vset.pattern.permute.xlu0 0
        %413 = vperm.xlu0 %412, %v251
        %v414 = vpop.permute.xlu0 %413
        %417 = vset.pattern.permute.xlu0 0
        %418 = vperm.xlu0 %417, %v252
        %v419 = vpop.permute.xlu0 %418
        %422 = vset.pattern.permute.xlu0 0
        %423 = vperm.xlu0 %422, %v253
        %v424 = vpop.permute.xlu0 %423
        %427 = vset.pattern.permute.xlu0 0
        %428 = vperm.xlu0 %427, %v254
        %v429 = vpop.permute.xlu0 %428
        %432 = vset.pattern.permute.xlu0 0
        %433 = vperm.xlu0 %432, %v255
        %v434 = vpop.permute.xlu0 %433
        %437 = vset.pattern.permute.xlu0 0
        %438 = vperm.xlu0 %437, %v256
        %v439 = vpop.permute.xlu0 %438
        %442 = vset.pattern.permute.xlu0 0
        %443 = vperm.xlu0 %442, %v257
        %v444 = vpop.permute.xlu0 %443
        %447 = vset.pattern.permute.xlu0 0
        %448 = vperm.xlu0 %447, %v258
        %v449 = vpop.permute.xlu0 %448
        %v452 = vperm.slane %v226, 0
        %v453 = vperm.slane %v226, 4
        %v456 = vperm.slane %v452, 0
        %v457 = vperm.slane %v453, 0
        %v458 = vmul.f32 %v294, %v456
        %v459 = vmul.f32 %v294, %v457
        %v460 = vmul.f32 %v299, %v456
        %v461 = vmul.f32 %v299, %v457
        %v462 = vmul.f32 %v304, %v456
        %v463 = vmul.f32 %v304, %v457
        %v464 = vmul.f32 %v309, %v456
        %v465 = vmul.f32 %v309, %v457
        %v466 = vmul.f32 %v314, %v456
        %v467 = vmul.f32 %v314, %v457
        %v468 = vmul.f32 %v319, %v456
        %v469 = vmul.f32 %v319, %v457
        %v470 = vmul.f32 %v324, %v456
        %v471 = vmul.f32 %v324, %v457
        %v472 = vmul.f32 %v329, %v456
        %v473 = vmul.f32 %v329, %v457
        %v474 = vmul.f32 %v334, %v456
        %v475 = vmul.f32 %v334, %v457
        %v476 = vmul.f32 %v339, %v456
        %v477 = vmul.f32 %v339, %v457
        %v478 = vmul.f32 %v344, %v456
        %v479 = vmul.f32 %v344, %v457
        %v480 = vmul.f32 %v349, %v456
        %v481 = vmul.f32 %v349, %v457
        %v482 = vmul.f32 %v354, %v456
        %v483 = vmul.f32 %v354, %v457
        %v484 = vmul.f32 %v359, %v456
        %v485 = vmul.f32 %v359, %v457
        %v486 = vmul.f32 %v364, %v456
        %v487 = vmul.f32 %v364, %v457
        %v488 = vmul.f32 %v369, %v456
        %v489 = vmul.f32 %v369, %v457
        %v490 = vmul.f32 %v374, %v456
        %v491 = vmul.f32 %v374, %v457
        %v492 = vmul.f32 %v379, %v456
        %v493 = vmul.f32 %v379, %v457
        %v494 = vmul.f32 %v384, %v456
        %v495 = vmul.f32 %v384, %v457
        %v496 = vmul.f32 %v389, %v456
        %v497 = vmul.f32 %v389, %v457
        %v498 = vmul.f32 %v394, %v456
        %v499 = vmul.f32 %v394, %v457
        %v500 = vmul.f32 %v399, %v456
        %v501 = vmul.f32 %v399, %v457
        %v502 = vmul.f32 %v404, %v456
        %v503 = vmul.f32 %v404, %v457
        %v504 = vmul.f32 %v409, %v456
        %v505 = vmul.f32 %v409, %v457
        %v506 = vmul.f32 %v414, %v456
        %v507 = vmul.f32 %v414, %v457
        %v508 = vmul.f32 %v419, %v456
        %v509 = vmul.f32 %v419, %v457
        %v510 = vmul.f32 %v424, %v456
        %v511 = vmul.f32 %v424, %v457
        %v512 = vmul.f32 %v429, %v456
        %v513 = vmul.f32 %v429, %v457
        %v514 = vmul.f32 %v434, %v456
        %v515 = vmul.f32 %v434, %v457
        %v516 = vmul.f32 %v439, %v456
        %v517 = vmul.f32 %v439, %v457
        %v518 = vmul.f32 %v444, %v456
        %v519 = vmul.f32 %v444, %v457
        %v520 = vmul.f32 %v449, %v456
        %v521 = vmul.f32 %v449, %v457
        %523 = vset.pattern.permute.xlu0 0
        %524 = vperm.xlu0 %523, %v259
        %v525 = vpop.permute.xlu0 %524
        %528 = vset.pattern.permute.xlu0 0
        %529 = vperm.xlu0 %528, %v260
        %v530 = vpop.permute.xlu0 %529
        %533 = vset.pattern.permute.xlu0 0
        %534 = vperm.xlu0 %533, %v261
        %v535 = vpop.permute.xlu0 %534
        %538 = vset.pattern.permute.xlu0 0
        %539 = vperm.xlu0 %538, %v262
        %v540 = vpop.permute.xlu0 %539
        %543 = vset.pattern.permute.xlu0 0
        %544 = vperm.xlu0 %543, %v263
        %v545 = vpop.permute.xlu0 %544
        %548 = vset.pattern.permute.xlu0 0
        %549 = vperm.xlu0 %548, %v264
        %v550 = vpop.permute.xlu0 %549
        %553 = vset.pattern.permute.xlu0 0
        %554 = vperm.xlu0 %553, %v265
        %v555 = vpop.permute.xlu0 %554
        %558 = vset.pattern.permute.xlu0 0
        %559 = vperm.xlu0 %558, %v266
        %v560 = vpop.permute.xlu0 %559
        %563 = vset.pattern.permute.xlu0 0
        %564 = vperm.xlu0 %563, %v267
        %v565 = vpop.permute.xlu0 %564
        %568 = vset.pattern.permute.xlu0 0
        %569 = vperm.xlu0 %568, %v268
        %v570 = vpop.permute.xlu0 %569
        %573 = vset.pattern.permute.xlu0 0
        %574 = vperm.xlu0 %573, %v269
        %v575 = vpop.permute.xlu0 %574
        %578 = vset.pattern.permute.xlu0 0
        %579 = vperm.xlu0 %578, %v270
        %v580 = vpop.permute.xlu0 %579
        %583 = vset.pattern.permute.xlu0 0
        %584 = vperm.xlu0 %583, %v271
        %v585 = vpop.permute.xlu0 %584
        %588 = vset.pattern.permute.xlu0 0
        %589 = vperm.xlu0 %588, %v272
        %v590 = vpop.permute.xlu0 %589
        %593 = vset.pattern.permute.xlu0 0
        %594 = vperm.xlu0 %593, %v273
        %v595 = vpop.permute.xlu0 %594
        %598 = vset.pattern.permute.xlu0 0
        %599 = vperm.xlu0 %598, %v274
        %v600 = vpop.permute.xlu0 %599
        %603 = vset.pattern.permute.xlu0 0
        %604 = vperm.xlu0 %603, %v275
        %v605 = vpop.permute.xlu0 %604
        %608 = vset.pattern.permute.xlu0 0
        %609 = vperm.xlu0 %608, %v276
        %v610 = vpop.permute.xlu0 %609
        %613 = vset.pattern.permute.xlu0 0
        %614 = vperm.xlu0 %613, %v277
        %v615 = vpop.permute.xlu0 %614
        %618 = vset.pattern.permute.xlu0 0
        %619 = vperm.xlu0 %618, %v278
        %v620 = vpop.permute.xlu0 %619
        %623 = vset.pattern.permute.xlu0 0
        %624 = vperm.xlu0 %623, %v279
        %v625 = vpop.permute.xlu0 %624
        %628 = vset.pattern.permute.xlu0 0
        %629 = vperm.xlu0 %628, %v280
        %v630 = vpop.permute.xlu0 %629
        %633 = vset.pattern.permute.xlu0 0
        %634 = vperm.xlu0 %633, %v281
        %v635 = vpop.permute.xlu0 %634
        %638 = vset.pattern.permute.xlu0 0
        %639 = vperm.xlu0 %638, %v282
        %v640 = vpop.permute.xlu0 %639
        %643 = vset.pattern.permute.xlu0 0
        %644 = vperm.xlu0 %643, %v283
        %v645 = vpop.permute.xlu0 %644
        %648 = vset.pattern.permute.xlu0 0
        %649 = vperm.xlu0 %648, %v284
        %v650 = vpop.permute.xlu0 %649
        %653 = vset.pattern.permute.xlu0 0
        %654 = vperm.xlu0 %653, %v285
        %v655 = vpop.permute.xlu0 %654
        %658 = vset.pattern.permute.xlu0 0
        %659 = vperm.xlu0 %658, %v286
        %v660 = vpop.permute.xlu0 %659
        %663 = vset.pattern.permute.xlu0 0
        %664 = vperm.xlu0 %663, %v287
        %v665 = vpop.permute.xlu0 %664
        %668 = vset.pattern.permute.xlu0 0
        %669 = vperm.xlu0 %668, %v288
        %v670 = vpop.permute.xlu0 %669
        %673 = vset.pattern.permute.xlu0 0
        %674 = vperm.xlu0 %673, %v289
        %v675 = vpop.permute.xlu0 %674
        %678 = vset.pattern.permute.xlu0 0
        %679 = vperm.xlu0 %678, %v290
        %v680 = vpop.permute.xlu0 %679
        %v682 = vadd.f32 %v525, %v458
        %v683 = vadd.f32 %v525, %v459
        %v684 = vadd.f32 %v530, %v460
        %v685 = vadd.f32 %v530, %v461
        %v686 = vadd.f32 %v535, %v462
        %v687 = vadd.f32 %v535, %v463
        %v688 = vadd.f32 %v540, %v464
        %v689 = vadd.f32 %v540, %v465
        %v690 = vadd.f32 %v545, %v466
        %v691 = vadd.f32 %v545, %v467
        %v692 = vadd.f32 %v550, %v468
        %v693 = vadd.f32 %v550, %v469
        %v694 = vadd.f32 %v555, %v470
        %v695 = vadd.f32 %v555, %v471
        %v696 = vadd.f32 %v560, %v472
        %v697 = vadd.f32 %v560, %v473
        %v698 = vadd.f32 %v565, %v474
        %v699 = vadd.f32 %v565, %v475
        %v700 = vadd.f32 %v570, %v476
        %v701 = vadd.f32 %v570, %v477
        %v702 = vadd.f32 %v575, %v478
        %v703 = vadd.f32 %v575, %v479
        %v704 = vadd.f32 %v580, %v480
        %v705 = vadd.f32 %v580, %v481
        %v706 = vadd.f32 %v585, %v482
        %v707 = vadd.f32 %v585, %v483
        %v708 = vadd.f32 %v590, %v484
        %v709 = vadd.f32 %v590, %v485
        %v710 = vadd.f32 %v595, %v486
        %v711 = vadd.f32 %v595, %v487
        %v712 = vadd.f32 %v600, %v488
        %v713 = vadd.f32 %v600, %v489
        %v714 = vadd.f32 %v605, %v490
        %v715 = vadd.f32 %v605, %v491
        %v716 = vadd.f32 %v610, %v492
        %v717 = vadd.f32 %v610, %v493
        %v718 = vadd.f32 %v615, %v494
        %v719 = vadd.f32 %v615, %v495
        %v720 = vadd.f32 %v620, %v496
        %v721 = vadd.f32 %v620, %v497
        %v722 = vadd.f32 %v625, %v498
        %v723 = vadd.f32 %v625, %v499
        %v724 = vadd.f32 %v630, %v500
        %v725 = vadd.f32 %v630, %v501
        %v726 = vadd.f32 %v635, %v502
        %v727 = vadd.f32 %v635, %v503
        %v728 = vadd.f32 %v640, %v504
        %v729 = vadd.f32 %v640, %v505
        %v730 = vadd.f32 %v645, %v506
        %v731 = vadd.f32 %v645, %v507
        %v732 = vadd.f32 %v650, %v508
        %v733 = vadd.f32 %v650, %v509
        %v734 = vadd.f32 %v655, %v510
        %v735 = vadd.f32 %v655, %v511
        %v736 = vadd.f32 %v660, %v512
        %v737 = vadd.f32 %v660, %v513
        %v738 = vadd.f32 %v665, %v514
        %v739 = vadd.f32 %v665, %v515
        %v740 = vadd.f32 %v670, %v516
        %v741 = vadd.f32 %v670, %v517
        %v742 = vadd.f32 %v675, %v518
        %v743 = vadd.f32 %v675, %v519
        %v744 = vadd.f32 %v680, %v520
        %v745 = vadd.f32 %v680, %v521
        %746 = vset.pattern.permute.xlu0 1
        %747 = vperm.xlu0 %746, %v227
        %v748 = vpop.permute.xlu0 %747
        %750 = vset.pattern.permute.xlu0 1
        %751 = vperm.xlu0 %750, %v228
        %v752 = vpop.permute.xlu0 %751
        %754 = vset.pattern.permute.xlu0 1
        %755 = vperm.xlu0 %754, %v229
        %v756 = vpop.permute.xlu0 %755
        %758 = vset.pattern.permute.xlu0 1
        %759 = vperm.xlu0 %758, %v230
        %v760 = vpop.permute.xlu0 %759
        %762 = vset.pattern.permute.xlu0 1
        %763 = vperm.xlu0 %762, %v231
        %v764 = vpop.permute.xlu0 %763
        %766 = vset.pattern.permute.xlu0 1
        %767 = vperm.xlu0 %766, %v232
        %v768 = vpop.permute.xlu0 %767
        %770 = vset.pattern.permute.xlu0 1
        %771 = vperm.xlu0 %770, %v233
        %v772 = vpop.permute.xlu0 %771
        %774 = vset.pattern.permute.xlu0 1
        %775 = vperm.xlu0 %774, %v234
        %v776 = vpop.permute.xlu0 %775
        %778 = vset.pattern.permute.xlu0 1
        %779 = vperm.xlu0 %778, %v235
        %v780 = vpop.permute.xlu0 %779
        %782 = vset.pattern.permute.xlu0 1
        %783 = vperm.xlu0 %782, %v236
        %v784 = vpop.permute.xlu0 %783
        %786 = vset.pattern.permute.xlu0 1
        %787 = vperm.xlu0 %786, %v237
        %v788 = vpop.permute.xlu0 %787
        %790 = vset.pattern.permute.xlu0 1
        %791 = vperm.xlu0 %790, %v238
        %v792 = vpop.permute.xlu0 %791
        %794 = vset.pattern.permute.xlu0 1
        %795 = vperm.xlu0 %794, %v239
        %v796 = vpop.permute.xlu0 %795
        %798 = vset.pattern.permute.xlu0 1
        %799 = vperm.xlu0 %798, %v240
        %v800 = vpop.permute.xlu0 %799
        %802 = vset.pattern.permute.xlu0 1
        %803 = vperm.xlu0 %802, %v241
        %v804 = vpop.permute.xlu0 %803
        %806 = vset.pattern.permute.xlu0 1
        %807 = vperm.xlu0 %806, %v242
        %v808 = vpop.permute.xlu0 %807
        %810 = vset.pattern.permute.xlu0 1
        %811 = vperm.xlu0 %810, %v243
        %v812 = vpop.permute.xlu0 %811
        %814 = vset.pattern.permute.xlu0 1
        %815 = vperm.xlu0 %814, %v244
        %v816 = vpop.permute.xlu0 %815
        %818 = vset.pattern.permute.xlu0 1
        %819 = vperm.xlu0 %818, %v245
        %v820 = vpop.permute.xlu0 %819
        %822 = vset.pattern.permute.xlu0 1
        %823 = vperm.xlu0 %822, %v246
        %v824 = vpop.permute.xlu0 %823
        %826 = vset.pattern.permute.xlu0 1
        %827 = vperm.xlu0 %826, %v247
        %v828 = vpop.permute.xlu0 %827
        %830 = vset.pattern.permute.xlu0 1
        %831 = vperm.xlu0 %830, %v248
        %v832 = vpop.permute.xlu0 %831
        %834 = vset.pattern.permute.xlu0 1
        %835 = vperm.xlu0 %834, %v249
        %v836 = vpop.permute.xlu0 %835
        %838 = vset.pattern.permute.xlu0 1
        %839 = vperm.xlu0 %838, %v250
        %v840 = vpop.permute.xlu0 %839
        %842 = vset.pattern.permute.xlu0 1
        %843 = vperm.xlu0 %842, %v251
        %v844 = vpop.permute.xlu0 %843
        %846 = vset.pattern.permute.xlu0 1
        %847 = vperm.xlu0 %846, %v252
        %v848 = vpop.permute.xlu0 %847
        %850 = vset.pattern.permute.xlu0 1
        %851 = vperm.xlu0 %850, %v253
        %v852 = vpop.permute.xlu0 %851
        %854 = vset.pattern.permute.xlu0 1
        %855 = vperm.xlu0 %854, %v254
        %v856 = vpop.permute.xlu0 %855
        %858 = vset.pattern.permute.xlu0 1
        %859 = vperm.xlu0 %858, %v255
        %v860 = vpop.permute.xlu0 %859
        %862 = vset.pattern.permute.xlu0 1
        %863 = vperm.xlu0 %862, %v256
        %v864 = vpop.permute.xlu0 %863
        %866 = vset.pattern.permute.xlu0 1
        %867 = vperm.xlu0 %866, %v257
        %v868 = vpop.permute.xlu0 %867
        %870 = vset.pattern.permute.xlu0 1
        %871 = vperm.xlu0 %870, %v258
        %v872 = vpop.permute.xlu0 %871
        %v874 = vperm.slane %v226, 1
        %v875 = vperm.slane %v226, 5
        %v878 = vperm.slane %v874, 1
        %v879 = vperm.slane %v875, 1
        %v880 = vmul.f32 %v748, %v878
        %v881 = vmul.f32 %v748, %v879
        %v882 = vmul.f32 %v752, %v878
        %v883 = vmul.f32 %v752, %v879
        %v884 = vmul.f32 %v756, %v878
        %v885 = vmul.f32 %v756, %v879
        %v886 = vmul.f32 %v760, %v878
        %v887 = vmul.f32 %v760, %v879
        %v888 = vmul.f32 %v764, %v878
        %v889 = vmul.f32 %v764, %v879
        %v890 = vmul.f32 %v768, %v878
        %v891 = vmul.f32 %v768, %v879
        %v892 = vmul.f32 %v772, %v878
        %v893 = vmul.f32 %v772, %v879
        %v894 = vmul.f32 %v776, %v878
        %v895 = vmul.f32 %v776, %v879
        %v896 = vmul.f32 %v780, %v878
        %v897 = vmul.f32 %v780, %v879
        %v898 = vmul.f32 %v784, %v878
        %v899 = vmul.f32 %v784, %v879
        %v900 = vmul.f32 %v788, %v878
        %v901 = vmul.f32 %v788, %v879
        %v902 = vmul.f32 %v792, %v878
        %v903 = vmul.f32 %v792, %v879
        %v904 = vmul.f32 %v796, %v878
        %v905 = vmul.f32 %v796, %v879
        %v906 = vmul.f32 %v800, %v878
        %v907 = vmul.f32 %v800, %v879
        %v908 = vmul.f32 %v804, %v878
        %v909 = vmul.f32 %v804, %v879
        %v910 = vmul.f32 %v808, %v878
        %v911 = vmul.f32 %v808, %v879
        %v912 = vmul.f32 %v812, %v878
        %v913 = vmul.f32 %v812, %v879
        %v914 = vmul.f32 %v816, %v878
        %v915 = vmul.f32 %v816, %v879
        %v916 = vmul.f32 %v820, %v878
        %v917 = vmul.f32 %v820, %v879
        %v918 = vmul.f32 %v824, %v878
        %v919 = vmul.f32 %v824, %v879
        %v920 = vmul.f32 %v828, %v878
        %v921 = vmul.f32 %v828, %v879
        %v922 = vmul.f32 %v832, %v878
        %v923 = vmul.f32 %v832, %v879
        %v924 = vmul.f32 %v836, %v878
        %v925 = vmul.f32 %v836, %v879
        %v926 = vmul.f32 %v840, %v878
        %v927 = vmul.f32 %v840, %v879
        %v928 = vmul.f32 %v844, %v878
        %v929 = vmul.f32 %v844, %v879
        %v930 = vmul.f32 %v848, %v878
        %v931 = vmul.f32 %v848, %v879
        %v932 = vmul.f32 %v852, %v878
        %v933 = vmul.f32 %v852, %v879
        %v934 = vmul.f32 %v856, %v878
        %v935 = vmul.f32 %v856, %v879
        %v936 = vmul.f32 %v860, %v878
        %v937 = vmul.f32 %v860, %v879
        %v938 = vmul.f32 %v864, %v878
        %v939 = vmul.f32 %v864, %v879
        %v940 = vmul.f32 %v868, %v878
        %v941 = vmul.f32 %v868, %v879
        %v942 = vmul.f32 %v872, %v878
        %v943 = vmul.f32 %v872, %v879
        %v944 = vadd.f32 %v682, %v880
        %v945 = vadd.f32 %v683, %v881
        %v946 = vadd.f32 %v684, %v882
        %v947 = vadd.f32 %v685, %v883
        %v948 = vadd.f32 %v686, %v884
        %v949 = vadd.f32 %v687, %v885
        %v950 = vadd.f32 %v688, %v886
        %v951 = vadd.f32 %v689, %v887
        %v952 = vadd.f32 %v690, %v888
        %v953 = vadd.f32 %v691, %v889
        %v954 = vadd.f32 %v692, %v890
        %v955 = vadd.f32 %v693, %v891
        %v956 = vadd.f32 %v694, %v892
        %v957 = vadd.f32 %v695, %v893
        %v958 = vadd.f32 %v696, %v894
        %v959 = vadd.f32 %v697, %v895
        %v960 = vadd.f32 %v698, %v896
        %v961 = vadd.f32 %v699, %v897
        %v962 = vadd.f32 %v700, %v898
        %v963 = vadd.f32 %v701, %v899
        %v964 = vadd.f32 %v702, %v900
        %v965 = vadd.f32 %v703, %v901
        %v966 = vadd.f32 %v704, %v902
        %v967 = vadd.f32 %v705, %v903
        %v968 = vadd.f32 %v706, %v904
        %v969 = vadd.f32 %v707, %v905
        %v970 = vadd.f32 %v708, %v906
        %v971 = vadd.f32 %v709, %v907
        %v972 = vadd.f32 %v710, %v908
        %v973 = vadd.f32 %v711, %v909
        %v974 = vadd.f32 %v712, %v910
        %v975 = vadd.f32 %v713, %v911
        %v976 = vadd.f32 %v714, %v912
        %v977 = vadd.f32 %v715, %v913
        %v978 = vadd.f32 %v716, %v914
        %v979 = vadd.f32 %v717, %v915
        %v980 = vadd.f32 %v718, %v916
        %v981 = vadd.f32 %v719, %v917
        %v982 = vadd.f32 %v720, %v918
        %v983 = vadd.f32 %v721, %v919
        %v984 = vadd.f32 %v722, %v920
        %v985 = vadd.f32 %v723, %v921
        %v986 = vadd.f32 %v724, %v922
        %v987 = vadd.f32 %v725, %v923
        %v988 = vadd.f32 %v726, %v924
        %v989 = vadd.f32 %v727, %v925
        %v990 = vadd.f32 %v728, %v926
        %v991 = vadd.f32 %v729, %v927
        %v992 = vadd.f32 %v730, %v928
        %v993 = vadd.f32 %v731, %v929
        %v994 = vadd.f32 %v732, %v930
        %v995 = vadd.f32 %v733, %v931
        %v996 = vadd.f32 %v734, %v932
        %v997 = vadd.f32 %v735, %v933
        %v998 = vadd.f32 %v736, %v934
        %v999 = vadd.f32 %v737, %v935
        %v1000 = vadd.f32 %v738, %v936
        %v1001 = vadd.f32 %v739, %v937
        %v1002 = vadd.f32 %v740, %v938
        %v1003 = vadd.f32 %v741, %v939
        %v1004 = vadd.f32 %v742, %v940
        %v1005 = vadd.f32 %v743, %v941
        %v1006 = vadd.f32 %v744, %v942
        %v1007 = vadd.f32 %v745, %v943
        %1008 = vset.pattern.permute.xlu0 2
        %1009 = vperm.xlu0 %1008, %v227
        %v1010 = vpop.permute.xlu0 %1009
        %1012 = vset.pattern.permute.xlu0 2
        %1013 = vperm.xlu0 %1012, %v228
        %v1014 = vpop.permute.xlu0 %1013
        %1016 = vset.pattern.permute.xlu0 2
        %1017 = vperm.xlu0 %1016, %v229
        %v1018 = vpop.permute.xlu0 %1017
        %1020 = vset.pattern.permute.xlu0 2
        %1021 = vperm.xlu0 %1020, %v230
        %v1022 = vpop.permute.xlu0 %1021
        %1024 = vset.pattern.permute.xlu0 2
        %1025 = vperm.xlu0 %1024, %v231
        %v1026 = vpop.permute.xlu0 %1025
        %1028 = vset.pattern.permute.xlu0 2
        %1029 = vperm.xlu0 %1028, %v232
        %v1030 = vpop.permute.xlu0 %1029
        %1032 = vset.pattern.permute.xlu0 2
        %1033 = vperm.xlu0 %1032, %v233
        %v1034 = vpop.permute.xlu0 %1033
        %1036 = vset.pattern.permute.xlu0 2
        %1037 = vperm.xlu0 %1036, %v234
        %v1038 = vpop.permute.xlu0 %1037
        %1040 = vset.pattern.permute.xlu0 2
        %1041 = vperm.xlu0 %1040, %v235
        %v1042 = vpop.permute.xlu0 %1041
        %1044 = vset.pattern.permute.xlu0 2
        %1045 = vperm.xlu0 %1044, %v236
        %v1046 = vpop.permute.xlu0 %1045
        %1048 = vset.pattern.permute.xlu0 2
        %1049 = vperm.xlu0 %1048, %v237
        %v1050 = vpop.permute.xlu0 %1049
        %1052 = vset.pattern.permute.xlu0 2
        %1053 = vperm.xlu0 %1052, %v238
        %v1054 = vpop.permute.xlu0 %1053
        %1056 = vset.pattern.permute.xlu0 2
        %1057 = vperm.xlu0 %1056, %v239
        %v1058 = vpop.permute.xlu0 %1057
        %1060 = vset.pattern.permute.xlu0 2
        %1061 = vperm.xlu0 %1060, %v240
        %v1062 = vpop.permute.xlu0 %1061
        %1064 = vset.pattern.permute.xlu0 2
        %1065 = vperm.xlu0 %1064, %v241
        %v1066 = vpop.permute.xlu0 %1065
        %1068 = vset.pattern.permute.xlu0 2
        %1069 = vperm.xlu0 %1068, %v242
        %v1070 = vpop.permute.xlu0 %1069
        %1072 = vset.pattern.permute.xlu0 2
        %1073 = vperm.xlu0 %1072, %v243
        %v1074 = vpop.permute.xlu0 %1073
        %1076 = vset.pattern.permute.xlu0 2
        %1077 = vperm.xlu0 %1076, %v244
        %v1078 = vpop.permute.xlu0 %1077
        %1080 = vset.pattern.permute.xlu0 2
        %1081 = vperm.xlu0 %1080, %v245
        %v1082 = vpop.permute.xlu0 %1081
        %1084 = vset.pattern.permute.xlu0 2
        %1085 = vperm.xlu0 %1084, %v246
        %v1086 = vpop.permute.xlu0 %1085
        %1088 = vset.pattern.permute.xlu0 2
        %1089 = vperm.xlu0 %1088, %v247
        %v1090 = vpop.permute.xlu0 %1089
        %1092 = vset.pattern.permute.xlu0 2
        %1093 = vperm.xlu0 %1092, %v248
        %v1094 = vpop.permute.xlu0 %1093
        %1096 = vset.pattern.permute.xlu0 2
        %1097 = vperm.xlu0 %1096, %v249
        %v1098 = vpop.permute.xlu0 %1097
        %1100 = vset.pattern.permute.xlu0 2
        %1101 = vperm.xlu0 %1100, %v250
        %v1102 = vpop.permute.xlu0 %1101
        %1104 = vset.pattern.permute.xlu0 2
        %1105 = vperm.xlu0 %1104, %v251
        %v1106 = vpop.permute.xlu0 %1105
        %1108 = vset.pattern.permute.xlu0 2
        %1109 = vperm.xlu0 %1108, %v252
        %v1110 = vpop.permute.xlu0 %1109
        %1112 = vset.pattern.permute.xlu0 2
        %1113 = vperm.xlu0 %1112, %v253
        %v1114 = vpop.permute.xlu0 %1113
        %1116 = vset.pattern.permute.xlu0 2
        %1117 = vperm.xlu0 %1116, %v254
        %v1118 = vpop.permute.xlu0 %1117
        %1120 = vset.pattern.permute.xlu0 2
        %1121 = vperm.xlu0 %1120, %v255
        %v1122 = vpop.permute.xlu0 %1121
        %1124 = vset.pattern.permute.xlu0 2
        %1125 = vperm.xlu0 %1124, %v256
        %v1126 = vpop.permute.xlu0 %1125
        %1128 = vset.pattern.permute.xlu0 2
        %1129 = vperm.xlu0 %1128, %v257
        %v1130 = vpop.permute.xlu0 %1129
        %1132 = vset.pattern.permute.xlu0 2
        %1133 = vperm.xlu0 %1132, %v258
        %v1134 = vpop.permute.xlu0 %1133
        %v1136 = vperm.slane %v226, 2
        %v1137 = vperm.slane %v226, 6
        %v1140 = vperm.slane %v1136, 2
        %v1141 = vperm.slane %v1137, 2
        %v1142 = vmul.f32 %v1010, %v1140
        %v1143 = vmul.f32 %v1010, %v1141
        %v1144 = vmul.f32 %v1014, %v1140
        %v1145 = vmul.f32 %v1014, %v1141
        %v1146 = vmul.f32 %v1018, %v1140
        %v1147 = vmul.f32 %v1018, %v1141
        %v1148 = vmul.f32 %v1022, %v1140
        %v1149 = vmul.f32 %v1022, %v1141
        %v1150 = vmul.f32 %v1026, %v1140
        %v1151 = vmul.f32 %v1026, %v1141
        %v1152 = vmul.f32 %v1030, %v1140
        %v1153 = vmul.f32 %v1030, %v1141
        %v1154 = vmul.f32 %v1034, %v1140
        %v1155 = vmul.f32 %v1034, %v1141
        %v1156 = vmul.f32 %v1038, %v1140
        %v1157 = vmul.f32 %v1038, %v1141
        %v1158 = vmul.f32 %v1042, %v1140
        %v1159 = vmul.f32 %v1042, %v1141
        %v1160 = vmul.f32 %v1046, %v1140
        %v1161 = vmul.f32 %v1046, %v1141
        %v1162 = vmul.f32 %v1050, %v1140
        %v1163 = vmul.f32 %v1050, %v1141
        %v1164 = vmul.f32 %v1054, %v1140
        %v1165 = vmul.f32 %v1054, %v1141
        %v1166 = vmul.f32 %v1058, %v1140
        %v1167 = vmul.f32 %v1058, %v1141
        %v1168 = vmul.f32 %v1062, %v1140
        %v1169 = vmul.f32 %v1062, %v1141
        %v1170 = vmul.f32 %v1066, %v1140
        %v1171 = vmul.f32 %v1066, %v1141
        %v1172 = vmul.f32 %v1070, %v1140
        %v1173 = vmul.f32 %v1070, %v1141
        %v1174 = vmul.f32 %v1074, %v1140
        %v1175 = vmul.f32 %v1074, %v1141
        %v1176 = vmul.f32 %v1078, %v1140
        %v1177 = vmul.f32 %v1078, %v1141
        %v1178 = vmul.f32 %v1082, %v1140
        %v1179 = vmul.f32 %v1082, %v1141
        %v1180 = vmul.f32 %v1086, %v1140
        %v1181 = vmul.f32 %v1086, %v1141
        %v1182 = vmul.f32 %v1090, %v1140
        %v1183 = vmul.f32 %v1090, %v1141
        %v1184 = vmul.f32 %v1094, %v1140
        %v1185 = vmul.f32 %v1094, %v1141
        %v1186 = vmul.f32 %v1098, %v1140
        %v1187 = vmul.f32 %v1098, %v1141
        %v1188 = vmul.f32 %v1102, %v1140
        %v1189 = vmul.f32 %v1102, %v1141
        %v1190 = vmul.f32 %v1106, %v1140
        %v1191 = vmul.f32 %v1106, %v1141
        %v1192 = vmul.f32 %v1110, %v1140
        %v1193 = vmul.f32 %v1110, %v1141
        %v1194 = vmul.f32 %v1114, %v1140
        %v1195 = vmul.f32 %v1114, %v1141
        %v1196 = vmul.f32 %v1118, %v1140
        %v1197 = vmul.f32 %v1118, %v1141
        %v1198 = vmul.f32 %v1122, %v1140
        %v1199 = vmul.f32 %v1122, %v1141
        %v1200 = vmul.f32 %v1126, %v1140
        %v1201 = vmul.f32 %v1126, %v1141
        %v1202 = vmul.f32 %v1130, %v1140
        %v1203 = vmul.f32 %v1130, %v1141
        %v1204 = vmul.f32 %v1134, %v1140
        %v1205 = vmul.f32 %v1134, %v1141
        %v1206 = vadd.f32 %v944, %v1142
        %v1207 = vadd.f32 %v945, %v1143
        %v1208 = vadd.f32 %v946, %v1144
        %v1209 = vadd.f32 %v947, %v1145
        %v1210 = vadd.f32 %v948, %v1146
        %v1211 = vadd.f32 %v949, %v1147
        %v1212 = vadd.f32 %v950, %v1148
        %v1213 = vadd.f32 %v951, %v1149
        %v1214 = vadd.f32 %v952, %v1150
        %v1215 = vadd.f32 %v953, %v1151
        %v1216 = vadd.f32 %v954, %v1152
        %v1217 = vadd.f32 %v955, %v1153
        %v1218 = vadd.f32 %v956, %v1154
        %v1219 = vadd.f32 %v957, %v1155
        %v1220 = vadd.f32 %v958, %v1156
        %v1221 = vadd.f32 %v959, %v1157
        %v1222 = vadd.f32 %v960, %v1158
        %v1223 = vadd.f32 %v961, %v1159
        %v1224 = vadd.f32 %v962, %v1160
        %v1225 = vadd.f32 %v963, %v1161
        %v1226 = vadd.f32 %v964, %v1162
        %v1227 = vadd.f32 %v965, %v1163
        %v1228 = vadd.f32 %v966, %v1164
        %v1229 = vadd.f32 %v967, %v1165
        %v1230 = vadd.f32 %v968, %v1166
        %v1231 = vadd.f32 %v969, %v1167
        %v1232 = vadd.f32 %v970, %v1168
        %v1233 = vadd.f32 %v971, %v1169
        %v1234 = vadd.f32 %v972, %v1170
        %v1235 = vadd.f32 %v973, %v1171
        %v1236 = vadd.f32 %v974, %v1172
        %v1237 = vadd.f32 %v975, %v1173
        %v1238 = vadd.f32 %v976, %v1174
        %v1239 = vadd.f32 %v977, %v1175
        %v1240 = vadd.f32 %v978, %v1176
        %v1241 = vadd.f32 %v979, %v1177
        %v1242 = vadd.f32 %v980, %v1178
        %v1243 = vadd.f32 %v981, %v1179
        %v1244 = vadd.f32 %v982, %v1180
        %v1245 = vadd.f32 %v983, %v1181
        %v1246 = vadd.f32 %v984, %v1182
        %v1247 = vadd.f32 %v985, %v1183
        %v1248 = vadd.f32 %v986, %v1184
        %v1249 = vadd.f32 %v987, %v1185
        %v1250 = vadd.f32 %v988, %v1186
        %v1251 = vadd.f32 %v989, %v1187
        %v1252 = vadd.f32 %v990, %v1188
        %v1253 = vadd.f32 %v991, %v1189
        %v1254 = vadd.f32 %v992, %v1190
        %v1255 = vadd.f32 %v993, %v1191
        %v1256 = vadd.f32 %v994, %v1192
        %v1257 = vadd.f32 %v995, %v1193
        %v1258 = vadd.f32 %v996, %v1194
        %v1259 = vadd.f32 %v997, %v1195
        %v1260 = vadd.f32 %v998, %v1196
        %v1261 = vadd.f32 %v999, %v1197
        %v1262 = vadd.f32 %v1000, %v1198
        %v1263 = vadd.f32 %v1001, %v1199
        %v1264 = vadd.f32 %v1002, %v1200
        %v1265 = vadd.f32 %v1003, %v1201
        %v1266 = vadd.f32 %v1004, %v1202
        %v1267 = vadd.f32 %v1005, %v1203
        %v1268 = vadd.f32 %v1006, %v1204
        %v1269 = vadd.f32 %v1007, %v1205
        %v1270 = vmax.f32 %v1206, 0.0
        %v1271 = vmax.f32 %v1207, 0.0
        %v1272 = vmax.f32 %v1208, 0.0
        %v1273 = vmax.f32 %v1209, 0.0
        %v1274 = vmax.f32 %v1210, 0.0
        %v1275 = vmax.f32 %v1211, 0.0
        %v1276 = vmax.f32 %v1212, 0.0
        %v1277 = vmax.f32 %v1213, 0.0
        %v1278 = vmax.f32 %v1214, 0.0
        %v1279 = vmax.f32 %v1215, 0.0
        %v1280 = vmax.f32 %v1216, 0.0
        %v1281 = vmax.f32 %v1217, 0.0
        %v1282 = vmax.f32 %v1218, 0.0
        %v1283 = vmax.f32 %v1219, 0.0
        %v1284 = vmax.f32 %v1220, 0.0
        %v1285 = vmax.f32 %v1221, 0.0
        %v1286 = vmax.f32 %v1222, 0.0
        %v1287 = vmax.f32 %v1223, 0.0
        %v1288 = vmax.f32 %v1224, 0.0
        %v1289 = vmax.f32 %v1225, 0.0
        %v1290 = vmax.f32 %v1226, 0.0
        %v1291 = vmax.f32 %v1227, 0.0
        %v1292 = vmax.f32 %v1228, 0.0
        %v1293 = vmax.f32 %v1229, 0.0
        %v1294 = vmax.f32 %v1230, 0.0
        %v1295 = vmax.f32 %v1231, 0.0
        %v1296 = vmax.f32 %v1232, 0.0
        %v1297 = vmax.f32 %v1233, 0.0
        %v1298 = vmax.f32 %v1234, 0.0
        %v1299 = vmax.f32 %v1235, 0.0
        %v1300 = vmax.f32 %v1236, 0.0
        %v1301 = vmax.f32 %v1237, 0.0
        %v1302 = vmax.f32 %v1238, 0.0
        %v1303 = vmax.f32 %v1239, 0.0
        %v1304 = vmax.f32 %v1240, 0.0
        %v1305 = vmax.f32 %v1241, 0.0
        %v1306 = vmax.f32 %v1242, 0.0
        %v1307 = vmax.f32 %v1243, 0.0
        %v1308 = vmax.f32 %v1244, 0.0
        %v1309 = vmax.f32 %v1245, 0.0
        %v1310 = vmax.f32 %v1246, 0.0
        %v1311 = vmax.f32 %v1247, 0.0
        %v1312 = vmax.f32 %v1248, 0.0
        %v1313 = vmax.f32 %v1249, 0.0
        %v1314 = vmax.f32 %v1250, 0.0
        %v1315 = vmax.f32 %v1251, 0.0
        %v1316 = vmax.f32 %v1252, 0.0
        %v1317 = vmax.f32 %v1253, 0.0
        %v1318 = vmax.f32 %v1254, 0.0
        %v1319 = vmax.f32 %v1255, 0.0
        %v1320 = vmax.f32 %v1256, 0.0
        %v1321 = vmax.f32 %v1257, 0.0
        %v1322 = vmax.f32 %v1258, 0.0
        %v1323 = vmax.f32 %v1259, 0.0
        %v1324 = vmax.f32 %v1260, 0.0
        %v1325 = vmax.f32 %v1261, 0.0
        %v1326 = vmax.f32 %v1262, 0.0
        %v1327 = vmax.f32 %v1263, 0.0
        %v1328 = vmax.f32 %v1264, 0.0
        %v1329 = vmax.f32 %v1265, 0.0
        %v1330 = vmax.f32 %v1266, 0.0
        %v1331 = vmax.f32 %v1267, 0.0
        %v1332 = vmax.f32 %v1268, 0.0
        %v1333 = vmax.f32 %v1269, 0.0
        %v1334 = vld [vmem:[%s3] sm:$0xff]
        %v1335 = vld [vmem:[%s3 + $0x8] sm:$0xff]
        %v1336 = vld [vmem:[%s3 + $0x10] sm:$0xff]
        %v1337 = vld [vmem:[%s3 + $0x18] sm:$0xff]
        %v1338 = vld [vmem:[%s4] sm:$0xff]
        %v1339 = vld [vmem:[%s4 + $0x8] sm:$0xff]
        %1341 = vset.pattern.permute.xlu0 0
        %1342 = vperm.xlu0 %1341, %v1338
        %v1343 = vpop.permute.xlu0 %1342
        %1346 = vset.pattern.permute.xlu0 0
        %1347 = vperm.xlu0 %1346, %v1339
        %v1348 = vpop.permute.xlu0 %1347
        %1350 = vmatpush.msra.mxu0 %v1300
        %1351 = vmatpush.msra.mxu0 %v1298
        %1352 = vmatpush.msra.mxu0 %v1296
        %1353 = vmatpush.msra.mxu0 %v1294
        %1354 = vmatpush.msra.mxu0 %v1292
        %1355 = vmatpush.msra.mxu0 %v1290
        %1356 = vmatpush.msra.mxu0 %v1288
        %1357 = vmatpush.msra.mxu0 %v1286
        %1358 = vmatpush.msra.mxu0 %v1284
        %1359 = vmatpush.msra.mxu0 %v1282
        %1360 = vmatpush.msra.mxu0 %v1280
        %1361 = vmatpush.msra.mxu0 %v1278
        %1362 = vmatpush.msra.mxu0 %v1276
        %1363 = vmatpush.msra.mxu0 %v1274
        %1364 = vmatpush.msra.mxu0 %v1272
        %1365 = vmatpush.msra.mxu0 %v1270
        %1366 = vmatmul.f32.gmra.mxu0 %v1334
        %v1367 = vpop.f32.mrf.mxu0
        %v1368 = vadd.f32 %v1343, %v1367
        %1369 = vmatmul.f32.gmra.mxu0 %v1336
        %v1370 = vpop.f32.mrf.mxu0
        %v1371 = vadd.f32 %v1348, %v1370
        %1372 = vdwg.mxu0
        %1373 = vmatpush.msra.mxu0 %v1332
        %1374 = vmatpush.msra.mxu0 %v1330
        %1375 = vmatpush.msra.mxu0 %v1328
        %1376 = vmatpush.msra.mxu0 %v1326
        %1377 = vmatpush.msra.mxu0 %v1324
        %1378 = vmatpush.msra.mxu0 %v1322
        %1379 = vmatpush.msra.mxu0 %v1320
        %1380 = vmatpush.msra.mxu0 %v1318
        %1381 = vmatpush.msra.mxu0 %v1316
        %1382 = vmatpush.msra.mxu0 %v1314
        %1383 = vmatpush.msra.mxu0 %v1312
        %1384 = vmatpush.msra.mxu0 %v1310
        %1385 = vmatpush.msra.mxu0 %v1308
        %1386 = vmatpush.msra.mxu0 %v1306
        %1387 = vmatpush.msra.mxu0 %v1304
        %1388 = vmatpush.msra.mxu0 %v1302
        %1389 = vmatmul.f32.gmra.mxu0 %v1335
        %v1390 = vpop.f32.mrf.mxu0
        %v1391 = vadd.f32 %v1368, %v1390
        %1392 = vmatmul.f32.gmra.mxu0 %v1337
        %v1393 = vpop.f32.mrf.mxu0
        %v1394 = vadd.f32 %v1371, %v1393
        %1395 = vdwg.mxu0
        %1396 = vmatpush.msra.mxu0 %v1301
        %1397 = vmatpush.msra.mxu0 %v1299
        %1398 = vmatpush.msra.mxu0 %v1297
        %1399 = vmatpush.msra.mxu0 %v1295
        %1400 = vmatpush.msra.mxu0 %v1293
        %1401 = vmatpush.msra.mxu0 %v1291
        %1402 = vmatpush.msra.mxu0 %v1289
        %1403 = vmatpush.msra.mxu0 %v1287
        %1404 = vmatpush.msra.mxu0 %v1285
        %1405 = vmatpush.msra.mxu0 %v1283
        %1406 = vmatpush.msra.mxu0 %v1281
        %1407 = vmatpush.msra.mxu0 %v1279
        %1408 = vmatpush.msra.mxu0 %v1277
        %1409 = vmatpush.msra.mxu0 %v1275
        %1410 = vmatpush.msra.mxu0 %v1273
        %1411 = vmatpush.msra.mxu0 %v1271
        %1412 = vmatmul.f32.gmra.mxu0 %v1334
        %v1413 = vpop.f32.mrf.mxu0
        %v1414 = vadd.f32 %v1343, %v1413
        %1415 = vmatmul.f32.gmra.mxu0 %v1336
        %v1416 = vpop.f32.mrf.mxu0
        %v1417 = vadd.f32 %v1348, %v1416
        %1418 = vdwg.mxu0
        %1419 = vmatpush.msra.mxu0 %v1333
        %1420 = vmatpush.msra.mxu0 %v1331
        %1421 = vmatpush.msra.mxu0 %v1329
        %1422 = vmatpush.msra.mxu0 %v1327
        %1423 = vmatpush.msra.mxu0 %v1325
        %1424 = vmatpush.msra.mxu0 %v1323
        %1425 = vmatpush.msra.mxu0 %v1321
        %1426 = vmatpush.msra.mxu0 %v1319
        %1427 = vmatpush.msra.mxu0 %v1317
        %1428 = vmatpush.msra.mxu0 %v1315
        %1429 = vmatpush.msra.mxu0 %v1313
        %1430 = vmatpush.msra.mxu0 %v1311
        %1431 = vmatpush.msra.mxu0 %v1309
        %1432 = vmatpush.msra.mxu0 %v1307
        %1433 = vmatpush.msra.mxu0 %v1305
        %1434 = vmatpush.msra.mxu0 %v1303
        %1435 = vmatmul.f32.gmra.mxu0 %v1335
        %v1436 = vpop.f32.mrf.mxu0
        %v1437 = vadd.f32 %v1414, %v1436
        %1438 = vmatmul.f32.gmra.mxu0 %v1337
        %v1439 = vpop.f32.mrf.mxu0
        %v1440 = vadd.f32 %v1417, %v1439
        %1441 = vdwg.mxu0
        %1442 = vst [vmem:[%s218] sm:$0xff] %v1391
        %1443 = vst [vmem:[%s218 + $0x8] sm:$0xff] %v1437
        %1444 = vst [vmem:[%s218 + $0x10] sm:$0xff] %v1394
        %1445 = vst [vmem:[%s218 + $0x18] sm:$0xff] %v1440
        %s1446 = sand.u32 %s137, 1
        %s1447 = scalar_lea.sflag [#allocation3], %s1446
        %s1448 = sand.u32 %s137, 1
        %s1449 = smul.addr %s1448, 32
        %s1450 = scalar_lea.vmem [#allocation2], %s1449
        // Predicated region
        $region41: #{tpu_custom_call.1} parent=39 // pred_check
          %p1451 = pneg %p147
        $region42: #{tpu_custom_call.1} parent=39 // pred_check_branch
          %1453 = sbr.rel (%p1451) target = $region44
        $region43: #{tpu_custom_call.1} parent=39 // pred_region
          %s1454 = smul.u32 2, %s19
          %1456 = vsyncadd %s1447, 0
          %s1457 = smul.addr %s1454, 8
          %s1458 = scalar_lea.hbm %s5, %s1457
          %s1459 = sshll.u32 %s1450, 4
          %s1460 = int_to_ptr.vmem [resolvable:$true] %s1459
          %s1461 = sshll.u32 %s1458, 4
          %s1462 = int_to_ptr.hbm [resolvable:$true] %s1461
          %1467 = dma.vmem_to_hbm [thread:$0]  %s1460, 512, %s1462, %s1447, 256, 512, 16
        $region44: #{tpu_custom_call.1} parent=39 // pred_fallthru
          _
      $region40: #{tpu_custom_call.1} parent=5 // pred_fallthru
        _
      %p1468 = scmp.le.s32.totalorder 2, %s14
      // Predicated region
      $region45: #{tpu_custom_call.1} parent=5 // pred_check
        %p1469 = pneg %p1468
      $region46: #{tpu_custom_call.1} parent=5 // pred_check_branch
        %1471 = sbr.rel (%p1469) target = $region48
      $region47: #{tpu_custom_call.1} parent=5 // pred_region
        %s1472 = ssub.s32 %s14, 2
        // Predicated region
        $region49: #{tpu_custom_call.1} parent=47 // pred_check
          %p1473 = pneg %p153
        $region50: #{tpu_custom_call.1} parent=47 // pred_check_branch
          %1475 = sbr.rel (%p1473) target = $region52
        $region51: #{tpu_custom_call.1} parent=47 // pred_region
          %s1476 = sand.u32 %s138, 1
          %s1477 = scalar_lea.sflag [#allocation3], %s1476
          %s1478 = sand.u32 %s138, 1
          %s1479 = smul.addr %s1478, 32
          %s1480 = scalar_lea.vmem [#allocation2], %s1479
          %1482 = dma.done %s1477, 512
        $region52: #{tpu_custom_call.1} parent=47 // pred_fallthru
          _
      $region48: #{tpu_custom_call.1} parent=5 // pred_fallthru
        _
    $region6: #{tpu_custom_call.1} parent=1 // loop_footer
      %s18 = sadd.s32 1, %s14
    $region7: #{tpu_custom_call.1} parent=1 // loop_footer_branch
      %13 = sbr.rel target = $region3
    $region8: #{tpu_custom_call.1} parent=1 // loop_exit
      _
    %1483 = vsyncpa [#allocation3], 1
    %s1484 = scalar_lea.sflag [#allocation3], 1
    %1485 = vsyncpa %s1484, 1

</llo_original>
